<compile_context>
chip_gen: v5e
topology: v5e:2x2
jax: 0.10.0
libtpu: 0.0.40
codegen_flags: <defaults>
</compile_context>

<pallas_src>
import jax
import jax.numpy as jnp
from jax.experimental import pallas as pl
from jax.experimental.pallas import tpu as pltpu

IN_DIM = 400
HID_DIM = 128
DEFAULT_TILE_B = 512


def _round_up(n: int, m: int) -> int:
    return ((n + m - 1) // m) * m


def head_kernel(x_ref, w1_ref, b1_ref, w2_ref, b2_ref, o_ref):
    # x_ref : (TILE_B, 400)  f32 (cast to bf16 below)
    # w1_ref: (400, 128)     bf16  (resident across grid steps)
    # b1_ref: (1, 128)       f32   (resident)
    # w2_ref: (1, 128)       f32   (resident; fc2 weight laid out as a lane row)
    # b2_ref: (1, 1)         f32 in SMEM (scalar)
    # o_ref : (TILE_B, 1)    f32

    # fc1 on the MXU: bf16 inputs, f32 accumulation.
    x = x_ref[...].astype(jnp.bfloat16)
    h = jnp.dot(x, w1_ref[...], preferred_element_type=jnp.float32)   # (TILE_B, 128)
    h = jnp.maximum(h + b1_ref[...], 0.0)                             # bias + ReLU on VPU

    # Dropout(p=0.25) is identity in eval mode (see TODO at top for training).

    # fc2: VPU multiply + XLU lane reduction instead of a degenerate N=1 MXU matmul.
    col = jnp.sum(h * w2_ref[...], axis=-1, keepdims=True)            # (TILE_B, 1)

    o_ref[...] = (col + b2_ref[0, 0]).astype(o_ref.dtype)


def head_forward(x, w1, b1, w2, b2, *, tile_b=None):
    """x: (B, 400); w1: (400, 128); b1: (128,); w2: (128, 1); b2: (1,). Returns (B,)."""
    B = x.shape[0]
    if tile_b is None:
        tile_b = min(DEFAULT_TILE_B, _round_up(B, 8))
    tile_b = _round_up(tile_b, 8)

    num_tiles = pl.cdiv(B, tile_b)
    padded_b = num_tiles * tile_b
    if padded_b != B:
        x = jnp.pad(x, ((0, padded_b - B), (0, 0)))

    w1_bf16 = w1.astype(jnp.bfloat16)                       # cast weights once
    b1_row = b1.reshape(1, HID_DIM).astype(jnp.float32)
    w2_row = w2.reshape(1, HID_DIM).astype(jnp.float32)     # fc2 weight as a lane row
    b2_2d = b2.reshape(1, 1).astype(jnp.float32)            # SMEM scalar

    out = pl.pallas_call(
        head_kernel,
        out_shape=jax.ShapeDtypeStruct((padded_b, 1), jnp.float32),
        grid_spec=pltpu.PrefetchScalarGridSpec(
            num_scalar_prefetch=0,
            grid=(num_tiles,),
            in_specs=[
                pl.BlockSpec((tile_b, IN_DIM), lambda i: (i, 0)),          # x: streamed per tile
                pl.BlockSpec((IN_DIM, HID_DIM), lambda i: (0, 0)),         # w1: resident
                pl.BlockSpec((1, HID_DIM), lambda i: (0, 0)),              # b1: resident
                pl.BlockSpec((1, HID_DIM), lambda i: (0, 0)),              # w2 row: resident
                pl.BlockSpec((1, 1), lambda i: (0, 0),
                             memory_space=pltpu.SMEM),                     # b2: SMEM scalar
            ],
            out_specs=pl.BlockSpec((tile_b, 1), lambda i: (i, 0)),
        ),
        compiler_params=pltpu.CompilerParams(
            dimension_semantics=("parallel",)),
    )(x, w1_bf16, b1_row, w2_row, b2_2d)

    return out[:B, 0]   # torch.squeeze(feat, dim=-1), drop batch padding


def init_params(key):
    """Deterministic parameter init matching the PyTorch module's shapes
    (fc1 weight stored pre-transposed as (in, out) for the kernel)."""
    k1, k2, k3, k4 = jax.random.split(key, 4)
    s1 = 1.0 / jnp.sqrt(float(IN_DIM))
    s2 = 1.0 / jnp.sqrt(float(HID_DIM))
    w1 = jax.random.uniform(k1, (IN_DIM, HID_DIM), jnp.float32, -s1, s1)
    b1 = jax.random.uniform(k2, (HID_DIM,), jnp.float32, -s1, s1)
    w2 = jax.random.uniform(k3, (HID_DIM, 1), jnp.float32, -s2, s2)
    b2 = jax.random.uniform(k4, (1,), jnp.float32, -s2, s2)
    return w1, b1, w2, b2


def _reference_bf16(x, w1, b1, w2, b2):
    """Plain-JAX reference following the same bf16-matmul / f32-accumulate recipe."""
    h = jnp.dot(x.astype(jnp.bfloat16), w1.astype(jnp.bfloat16),
                preferred_element_type=jnp.float32)
    h = jnp.maximum(h + b1, 0.0)
    return jnp.sum(h * w2.reshape(1, HID_DIM), axis=-1) + b2[0]


def _reference_f32(x, w1, b1, w2, b2):
    h = jnp.maximum(x @ w1 + b1, 0.0)
    return jnp.squeeze(h @ w2 + b2, axis=-1)


if __name__ == "__main__":
    key = jax.random.PRNGKey(0)
    kx, kp = jax.random.split(key)
    w1, b1, w2, b2 = init_params(kp)

    # Small batch (single tile) and a batch that exercises multiple grid steps + padding.
    for batch in (8, 700):
        x = jax.random.normal(jax.random.fold_in(kx, batch), (batch, IN_DIM), jnp.float32)

        out = head_forward(x, w1, b1, w2, b2)
        out = jax.block_until_ready(out)
        assert out.shape == (batch,)

        ref_bf16 = _reference_bf16(x, w1, b1, w2, b2)
        ref_f32 = _reference_f32(x, w1, b1, w2, b2)
        assert jnp.allclose(out, ref_bf16, atol=1e-3, rtol=1e-3), (
            f"mismatch vs bf16-matched reference at B={batch}: "
            f"{float(jnp.max(jnp.abs(out - ref_bf16)))}")
        assert jnp.allclose(out, ref_f32, atol=5e-2, rtol=5e-2), (
            f"mismatch vs f32 reference at B={batch}: "
            f"{float(jnp.max(jnp.abs(out - ref_f32)))}")

    print("KERNEL_OK")
</pallas_src>

<mosaic_0001>
module attributes {stable_mosaic.version = 11 : i64} {
  func.func @head_kernel(%arg0: i32, %arg1: memref<8x400xf32, #tpu.memory_space<vmem>>, %arg2: memref<400x128xbf16, #tpu.memory_space<vmem>>, %arg3: memref<1x128xf32, #tpu.memory_space<vmem>>, %arg4: memref<1x128xf32, #tpu.memory_space<vmem>>, %arg5: memref<1x1xf32, #tpu.memory_space<smem>>, %arg6: memref<8x1xf32, #tpu.memory_space<vmem>>) attributes {dimension_semantics = [#tpu.dimension_semantics<parallel>], iteration_bounds = array<i64: 1>, scalar_prefetch = 0 : i64, scratch_operands = 0 : i64, tpu.core_type = #tpu.core_type<tc>, window_params = [{transform_indices = @transform_0, window_bounds = array<i64: 8, 400>}, {pipeline_mode = #tpu.pipeline_mode<synchronous>, transform_indices = @transform_1, window_bounds = array<i64: 400, 128>}, {pipeline_mode = #tpu.pipeline_mode<synchronous>, transform_indices = @transform_2, window_bounds = array<i64: 1, 128>}, {pipeline_mode = #tpu.pipeline_mode<synchronous>, transform_indices = @transform_3, window_bounds = array<i64: 1, 128>}, {transform_indices = @transform_4, window_bounds = array<i64: 1, 1>}, {transform_indices = @transform_5, window_bounds = array<i64: 8, 1>}]} {
    %c0 = arith.constant 0 : index
    %c0_0 = arith.constant 0 : index
    %0 = vector.load %arg1[%c0, %c0_0] : memref<8x400xf32, #tpu.memory_space<vmem>>, vector<8x400xf32>
    %1 = arith.truncf %0 : vector<8x400xf32> to vector<8x400xbf16>
    %c0_1 = arith.constant 0 : index
    %c0_2 = arith.constant 0 : index
    %2 = vector.load %arg2[%c0_1, %c0_2] : memref<400x128xbf16, #tpu.memory_space<vmem>>, vector<400x128xbf16>
    %cst = arith.constant dense<0.000000e+00> : vector<8x128xf32>
    %3 = tpu.matmul %1, %2, %cst {dimension_numbers = #tpu.dot_dimension_numbers<[1], [0], [0], [1], [0, 0, 1, 1], [], []>} : vector<8x400xbf16>, vector<400x128xbf16>, vector<8x128xf32> -> vector<8x128xf32>
    %c0_3 = arith.constant 0 : index
    %c0_4 = arith.constant 0 : index
    %4 = vector.load %arg3[%c0_3, %c0_4] : memref<1x128xf32, #tpu.memory_space<vmem>>, vector<1x128xf32>
    %5 = vector.broadcast %4 : vector<1x128xf32> to vector<8x128xf32>
    %6 = arith.addf %3, %5 : vector<8x128xf32>
    %cst_5 = arith.constant 0.000000e+00 : f32
    %7 = vector.broadcast %cst_5 : f32 to vector<8x128xf32>
    %8 = arith.maximumf %6, %7 : vector<8x128xf32>
    %c0_6 = arith.constant 0 : index
    %c0_7 = arith.constant 0 : index
    %9 = vector.load %arg4[%c0_6, %c0_7] : memref<1x128xf32, #tpu.memory_space<vmem>>, vector<1x128xf32>
    %10 = vector.broadcast %9 : vector<1x128xf32> to vector<8x128xf32>
    %11 = arith.mulf %8, %10 : vector<8x128xf32>
    %cst_8 = arith.constant dense<0.000000e+00> : vector<8xf32>
    %12 = vector.multi_reduction <add>, %11, %cst_8 [1] : vector<8x128xf32> to vector<8xf32>
    %13 = vector.shape_cast %12 : vector<8xf32> to vector<8x1xf32>
    %c0_9 = arith.constant 0 : index
    %c0_10 = arith.constant 0 : index
    %14 = memref.load %arg5[%c0_9, %c0_10] : memref<1x1xf32, #tpu.memory_space<smem>>
    %15 = vector.broadcast %14 : f32 to vector<8x1xf32>
    %16 = arith.addf %13, %15 : vector<8x1xf32>
    %c0_11 = arith.constant 0 : index
    %c0_12 = arith.constant 0 : index
    %17 = vector.load %arg6[%c0_11, %c0_12] : memref<8x1xf32, #tpu.memory_space<vmem>>, vector<8x1xf32>
    tpu.vector_store %arg6[%c0_11, %c0_12], %16 {strides = array<i32>} : memref<8x1xf32, #tpu.memory_space<vmem>>, vector<8x1xf32>,
    return
  }
  func.func @transform_0(%arg0: i32) -> (i32, i32) {
    %c0_i32 = arith.constant 0 : i32
    %c0_i32_0 = arith.constant 0 : i32
    return %arg0, %c0_i32 : i32, i32
  }
  func.func @transform_1(%arg0: i32) -> (i32, i32) {
    %c0_i32 = arith.constant 0 : i32
    %c0_i32_0 = arith.constant 0 : i32
    %c0_i32_1 = arith.constant 0 : i32
    return %c0_i32, %c0_i32_0 : i32, i32
  }
  func.func @transform_2(%arg0: i32) -> (i32, i32) {
    %c0_i32 = arith.constant 0 : i32
    %c0_i32_0 = arith.constant 0 : i32
    %c0_i32_1 = arith.constant 0 : i32
    return %c0_i32, %c0_i32_0 : i32, i32
  }
  func.func @transform_3(%arg0: i32) -> (i32, i32) {
    %c0_i32 = arith.constant 0 : i32
    %c0_i32_0 = arith.constant 0 : i32
    %c0_i32_1 = arith.constant 0 : i32
    return %c0_i32, %c0_i32_0 : i32, i32
  }
  func.func @transform_4(%arg0: i32) -> (i32, i32) {
    %c0_i32 = arith.constant 0 : i32
    %c0_i32_0 = arith.constant 0 : i32
    %c0_i32_1 = arith.constant 0 : i32
    return %c0_i32, %c0_i32_0 : i32, i32
  }
  func.func @transform_5(%arg0: i32) -> (i32, i32) {
    %c0_i32 = arith.constant 0 : i32
    %c0_i32_0 = arith.constant 0 : i32
    return %arg0, %c0_i32 : i32, i32
  }
}

</mosaic_0001>

<llo_original>
// kernel: tpu_custom_call.1
$region0: #{tpu_custom_call.1}
  #allocation0 [shape = 'u32[]', space=smem, size = 0x4, offset = 0x4, fixed_abs, tag = 'smem constant byte address 0x4 - core index']
  #allocation1 [shape = 'u32[72,128]{1,0:T(1,128)}', space=vmem, size = 0x9000, scoped, tag = 'internal scratch']
  #allocation2 [shape = 'f32[1,1]{1,0:T(1,128)S(6)}', space=smem, size = 0x200, scoped, tag = 'scoped memory for tpu_custom_call.1']
  %s0 = inlined_call_operand.hbm [shape: f32[8,400], index: 0, kind: input, shape index: {}]
  %s1 = inlined_call_operand.hbm [shape: bf16[400,128], index: 1, kind: input, shape index: {}]
  %s2 = inlined_call_operand.vmem [shape: f32[1,128], index: 2, kind: input, shape index: {}]
  %s3 = inlined_call_operand.vmem [shape: f32[1,128], index: 3, kind: input, shape index: {}]
  %s4 = inlined_call_operand.<no memory space> [shape: f32[1,1], index: 4, kind: input, shape index: {}]
  %s5 = inlined_call_operand.vmem [shape: f32[8,1], index: 5, kind: output, shape index: {}]
  %s6 = sld [smem:[#allocation0]]
  $region38: #{tpu_custom_call.1} parent=0
    _
  %s8 = ssub.s32 1, %s6
  %s9 = scalar_select 0, %s8, %s6
  %10 = sst [smem:[#allocation2]] %s4
  $region1: #{tpu_custom_call.1} parent=0
    #allocation3 [shape = 'u8[16384]{0}', space=vmem, size = 0x4000, scoped, tag = 'input window, operand 0, single buffered']
    #allocation4 [shape = 's32[1]{0}', space=sflag, size = 0x4, scoped, tag = 'scoped memory for tpu_custom_call.1']
    #allocation5 [shape = 'u8[102400]{0}', space=vmem, size = 0x19000, scoped, tag = 'input window, operand 1, single buffered']
    #allocation6 [shape = 's32[1]{0}', space=sflag, size = 0x4, scoped, tag = 'scoped memory for tpu_custom_call.1']
    %11 = vsyncpa [#allocation4], 0
    %12 = vsyncpa [#allocation6], 0
    // Predicated region
    $region2: #{tpu_custom_call.1} parent=1 // pred_check
      _
    $region3: #{tpu_custom_call.1} parent=1 // pred_check_branch
      %14 = sbr.rel (0) target = $region5
    $region4: #{tpu_custom_call.1} parent=1 // pred_region
      %16 = vsyncadd [#allocation4], 0
      %s18 = sshll.u32 %s0, 4
      %s19 = int_to_ptr.hbm [resolvable:$true] %s18
      %s20 = sshll.u32 [#allocation3], 4
      %s21 = int_to_ptr.vmem [resolvable:$true] %s20
      %23 = dma.hbm_to_vmem [thread:$0]  %s19, 512, %s21, [#allocation4]
    $region5: #{tpu_custom_call.1} parent=1 // pred_fallthru
      _
    // Predicated region
    $region6: #{tpu_custom_call.1} parent=1 // pred_check
      _
    $region7: #{tpu_custom_call.1} parent=1 // pred_check_branch
      %25 = sbr.rel (0) target = $region9
    $region8: #{tpu_custom_call.1} parent=1 // pred_region
      %27 = vsyncadd [#allocation6], 0
      %s28 = sshll.u32 %s1, 4
      %s29 = int_to_ptr.hbm [resolvable:$true] %s28
      %s30 = sshll.u32 [#allocation5], 4
      %s31 = int_to_ptr.vmem [resolvable:$true] %s30
      %36 = dma.hbm_to_vmem [thread:$0]  %s29, 3200, %s31, [#allocation6], 64, 64, 4
    $region9: #{tpu_custom_call.1} parent=1 // pred_fallthru
      _
    // Predicated region
    $region10: #{tpu_custom_call.1} parent=1 // pred_check
      _
    $region11: #{tpu_custom_call.1} parent=1 // pred_check_branch
      %38 = sbr.rel (0) target = $region13
    $region12: #{tpu_custom_call.1} parent=1 // pred_region
      _
    $region13: #{tpu_custom_call.1} parent=1 // pred_fallthru
      _
    // Predicated region
    $region14: #{tpu_custom_call.1} parent=1 // pred_check
      _
    $region15: #{tpu_custom_call.1} parent=1 // pred_check_branch
      %40 = sbr.rel (0) target = $region17
    $region16: #{tpu_custom_call.1} parent=1 // pred_region
      _
    $region17: #{tpu_custom_call.1} parent=1 // pred_fallthru
      _
    // Predicated region
    $region18: #{tpu_custom_call.1} parent=1 // pred_check
      _
    $region19: #{tpu_custom_call.1} parent=1 // pred_check_branch
      %42 = sbr.rel (0) target = $region21
    $region20: #{tpu_custom_call.1} parent=1 // pred_region
      _
    $region21: #{tpu_custom_call.1} parent=1 // pred_fallthru
      _
    // Predicated region
    $region22: #{tpu_custom_call.1} parent=1 // pred_check
      _
    $region23: #{tpu_custom_call.1} parent=1 // pred_check_branch
      %44 = sbr.rel (0) target = $region25
    $region24: #{tpu_custom_call.1} parent=1 // pred_region
      %46 = dma.done [#allocation4], 512
    $region25: #{tpu_custom_call.1} parent=1 // pred_fallthru
      _
    // Predicated region
    $region26: #{tpu_custom_call.1} parent=1 // pred_check
      _
    $region27: #{tpu_custom_call.1} parent=1 // pred_check_branch
      %48 = sbr.rel (0) target = $region29
    $region28: #{tpu_custom_call.1} parent=1 // pred_region
      %50 = dma.done [#allocation6], 3200
    $region29: #{tpu_custom_call.1} parent=1 // pred_fallthru
      _
    %v52 = vld [vmem:[#allocation3] sm:$0xff]
    %v53 = vld [vmem:[#allocation3 + $0x8] sm:$0xff]
    %v54 = vld [vmem:[#allocation3 + $0x10] sm:$0xff]
    %v55 = vld [vmem:[#allocation3 + $0x18] sm:$0xff]
    %v56 = vpack.c.bf16 %v52, %v52
    %v57 = vpack.c.bf16 %v53, %v53
    %v58 = vpack.c.bf16 %v54, %v54
    %v59 = vpack.c.bf16 %v55, %v55
    %v60 = vld [vmem:[#allocation5] sm:$0xf]
    %v61 = vld [vmem:[#allocation5 + $0x4] sm:$0xf]
    %v62 = vld [vmem:[#allocation5 + $0x8] sm:$0xf]
    %v63 = vld [vmem:[#allocation5 + $0xc] sm:$0xf]
    %v64 = vld [vmem:[#allocation5 + $0x10] sm:$0xf]
    %v65 = vld [vmem:[#allocation5 + $0x14] sm:$0xf]
    %v66 = vld [vmem:[#allocation5 + $0x18] sm:$0xf]
    %v67 = vld [vmem:[#allocation5 + $0x1c] sm:$0xf]
    %v68 = vld [vmem:[#allocation5 + $0x20] sm:$0xf]
    %v69 = vld [vmem:[#allocation5 + $0x24] sm:$0xf]
    %v70 = vld [vmem:[#allocation5 + $0x28] sm:$0xf]
    %v71 = vld [vmem:[#allocation5 + $0x2c] sm:$0xf]
    %v72 = vld [vmem:[#allocation5 + $0x30] sm:$0xf]
    %v73 = vld [vmem:[#allocation5 + $0x34] sm:$0xf]
    %v74 = vld [vmem:[#allocation5 + $0x38] sm:$0xf]
    %v75 = vld [vmem:[#allocation5 + $0x3c] sm:$0xf]
    %v76 = vld [vmem:[#allocation5 + $0x40] sm:$0xf]
    %v77 = vld [vmem:[#allocation5 + $0x44] sm:$0xf]
    %v78 = vld [vmem:[#allocation5 + $0x48] sm:$0xf]
    %v79 = vld [vmem:[#allocation5 + $0x4c] sm:$0xf]
    %v80 = vld [vmem:[#allocation5 + $0x50] sm:$0xf]
    %v81 = vld [vmem:[#allocation5 + $0x54] sm:$0xf]
    %v82 = vld [vmem:[#allocation5 + $0x58] sm:$0xf]
    %v83 = vld [vmem:[#allocation5 + $0x5c] sm:$0xf]
    %v84 = vld [vmem:[#allocation5 + $0x60] sm:$0xf]
    %v85 = vld [vmem:[#allocation5 + $0x64] sm:$0xf]
    %v86 = vld [vmem:[#allocation5 + $0x68] sm:$0xf]
    %v87 = vld [vmem:[#allocation5 + $0x6c] sm:$0xf]
    %v88 = vld [vmem:[#allocation5 + $0x70] sm:$0xf]
    %v89 = vld [vmem:[#allocation5 + $0x74] sm:$0xf]
    %v90 = vld [vmem:[#allocation5 + $0x78] sm:$0xf]
    %v91 = vld [vmem:[#allocation5 + $0x7c] sm:$0xf]
    %v92 = vld [vmem:[#allocation5 + $0x80] sm:$0xf]
    %v93 = vld [vmem:[#allocation5 + $0x84] sm:$0xf]
    %v94 = vld [vmem:[#allocation5 + $0x88] sm:$0xf]
    %v95 = vld [vmem:[#allocation5 + $0x8c] sm:$0xf]
    %v96 = vld [vmem:[#allocation5 + $0x90] sm:$0xf]
    %v97 = vld [vmem:[#allocation5 + $0x94] sm:$0xf]
    %v98 = vld [vmem:[#allocation5 + $0x98] sm:$0xf]
    %v99 = vld [vmem:[#allocation5 + $0x9c] sm:$0xf]
    %v100 = vld [vmem:[#allocation5 + $0xa0] sm:$0xf]
    %v101 = vld [vmem:[#allocation5 + $0xa4] sm:$0xf]
    %v102 = vld [vmem:[#allocation5 + $0xa8] sm:$0xf]
    %v103 = vld [vmem:[#allocation5 + $0xac] sm:$0xf]
    %v104 = vld [vmem:[#allocation5 + $0xb0] sm:$0xf]
    %v105 = vld [vmem:[#allocation5 + $0xb4] sm:$0xf]
    %v106 = vld [vmem:[#allocation5 + $0xb8] sm:$0xf]
    %v107 = vld [vmem:[#allocation5 + $0xbc] sm:$0xf]
    %v108 = vld [vmem:[#allocation5 + $0xc0] sm:$0xf]
    %v109 = vld [vmem:[#allocation5 + $0xc4] sm:$0xf]
    %v110 = vld [vmem:[%s2] sm:$0x1]
    %v112 = vperm.slane %v110, 0
    %v164 = vunpack.c.l.b16 %v60
    %v165 = vunpack.c.l.b16 %v61
    %v166 = vunpack.c.l.b16 %v62
    %v167 = vunpack.c.l.b16 %v63
    %v168 = vunpack.c.l.b16 %v64
    %v169 = vunpack.c.l.b16 %v65
    %v170 = vunpack.c.l.b16 %v66
    %v171 = vunpack.c.l.b16 %v67
    %v172 = vunpack.c.l.b16 %v68
    %v173 = vunpack.c.l.b16 %v69
    %v174 = vunpack.c.l.b16 %v70
    %v175 = vunpack.c.l.b16 %v71
    %v176 = vunpack.c.l.b16 %v72
    %v177 = vunpack.c.l.b16 %v73
    %v178 = vunpack.c.l.b16 %v74
    %v179 = vunpack.c.l.b16 %v75
    %v180 = vunpack.c.l.b16 %v76
    %v181 = vunpack.c.l.b16 %v77
    %v182 = vunpack.c.l.b16 %v78
    %v183 = vunpack.c.l.b16 %v79
    %v184 = vunpack.c.l.b16 %v80
    %v185 = vunpack.c.l.b16 %v81
    %v186 = vunpack.c.l.b16 %v82
    %v187 = vunpack.c.l.b16 %v83
    %v188 = vunpack.c.l.b16 %v84
    %v189 = vunpack.c.l.b16 %v85
    %v190 = vunpack.c.l.b16 %v86
    %v191 = vunpack.c.l.b16 %v87
    %v192 = vunpack.c.l.b16 %v88
    %v193 = vunpack.c.l.b16 %v89
    %v194 = vunpack.c.l.b16 %v90
    %v195 = vunpack.c.l.b16 %v91
    %v196 = vunpack.c.l.b16 %v92
    %v197 = vunpack.c.l.b16 %v93
    %v198 = vunpack.c.l.b16 %v94
    %v199 = vunpack.c.l.b16 %v95
    %v200 = vunpack.c.l.b16 %v96
    %v201 = vunpack.c.l.b16 %v97
    %v202 = vunpack.c.l.b16 %v98
    %v203 = vunpack.c.l.b16 %v99
    %v204 = vunpack.c.l.b16 %v100
    %v205 = vunpack.c.l.b16 %v101
    %v206 = vunpack.c.l.b16 %v102
    %v207 = vunpack.c.l.b16 %v103
    %v208 = vunpack.c.l.b16 %v104
    %v209 = vunpack.c.l.b16 %v105
    %v210 = vunpack.c.l.b16 %v106
    %v211 = vunpack.c.l.b16 %v107
    %v212 = vunpack.c.l.b16 %v108
    %v213 = vunpack.c.l.b16 %v109
    %v214 = vpack.c.b16 %v165, %v164
    %v215 = vpack.c.b16 %v167, %v166
    %v216 = vpack.c.b16 %v169, %v168
    %v217 = vpack.c.b16 %v171, %v170
    %v218 = vpack.c.b16 %v173, %v172
    %v219 = vpack.c.b16 %v175, %v174
    %v220 = vpack.c.b16 %v177, %v176
    %v221 = vpack.c.b16 %v179, %v178
    %v222 = vpack.c.b16 %v181, %v180
    %v223 = vpack.c.b16 %v183, %v182
    %v224 = vpack.c.b16 %v185, %v184
    %v225 = vpack.c.b16 %v187, %v186
    %v226 = vpack.c.b16 %v189, %v188
    %v227 = vpack.c.b16 %v191, %v190
    %v228 = vpack.c.b16 %v193, %v192
    %v229 = vpack.c.b16 %v195, %v194
    %v230 = vpack.c.b16 %v197, %v196
    %v231 = vpack.c.b16 %v199, %v198
    %v232 = vpack.c.b16 %v201, %v200
    %v233 = vpack.c.b16 %v203, %v202
    %v234 = vpack.c.b16 %v205, %v204
    %v235 = vpack.c.b16 %v207, %v206
    %v236 = vpack.c.b16 %v209, %v208
    %v237 = vpack.c.b16 %v211, %v210
    %v238 = vpack.c.b16 %v213, %v212
    %vm264 = vcmask 130048
    %v266 = vsel %vm264, %v59, 0
    %268 = vmatpush.bf16.msra.mxu0 %v221
    %269 = vmatpush.bf16.msra.mxu0 %v220
    %270 = vmatpush.bf16.msra.mxu0 %v219
    %271 = vmatpush.bf16.msra.mxu0 %v218
    %272 = vmatpush.bf16.msra.mxu0 %v217
    %273 = vmatpush.bf16.msra.mxu0 %v216
    %274 = vmatpush.bf16.msra.mxu0 %v215
    %275 = vmatpush.bf16.msra.mxu0 %v214
    %276 = vmatmul.bf16.gmra.mxu0 %v56
    %v277 = vpop.f32.mrf.mxu0
    %v278 = vadd.f32 %v112, %v277
    %v279 = vpop.f32.mrf.mxu0
    %280 = vdwg.mxu0
    %281 = vmatpush.bf16.msra.mxu0 %v229
    %282 = vmatpush.bf16.msra.mxu0 %v228
    %283 = vmatpush.bf16.msra.mxu0 %v227
    %284 = vmatpush.bf16.msra.mxu0 %v226
    %285 = vmatpush.bf16.msra.mxu0 %v225
    %286 = vmatpush.bf16.msra.mxu0 %v224
    %287 = vmatpush.bf16.msra.mxu0 %v223
    %288 = vmatpush.bf16.msra.mxu0 %v222
    %289 = vmatmul.bf16.gmra.mxu0 %v57
    %v290 = vpop.f32.mrf.mxu0
    %v291 = vadd.f32 %v278, %v290
    %v292 = vpop.f32.mrf.mxu0
    %293 = vdwg.mxu0
    %294 = vmatpush.bf16.msra.mxu0 %v237
    %295 = vmatpush.bf16.msra.mxu0 %v236
    %296 = vmatpush.bf16.msra.mxu0 %v235
    %297 = vmatpush.bf16.msra.mxu0 %v234
    %298 = vmatpush.bf16.msra.mxu0 %v233
    %299 = vmatpush.bf16.msra.mxu0 %v232
    %300 = vmatpush.bf16.msra.mxu0 %v231
    %301 = vmatpush.bf16.msra.mxu0 %v230
    %302 = vmatmul.bf16.gmra.mxu0 %v58
    %v303 = vpop.f32.mrf.mxu0
    %v304 = vadd.f32 %v291, %v303
    %v305 = vpop.f32.mrf.mxu0
    %306 = vdwg.mxu0
    %307 = vmatpush.bf16.msra.mxu0 0
    %308 = vmatpush.bf16.msra.mxu0 0
    %309 = vmatpush.bf16.msra.mxu0 0
    %310 = vmatpush.bf16.msra.mxu0 0
    %311 = vmatpush.bf16.msra.mxu0 0
    %312 = vmatpush.bf16.msra.mxu0 0
    %313 = vmatpush.bf16.msra.mxu0 0
    %314 = vmatpush.bf16.msra.mxu0 %v238
    %315 = vmatmul.bf16.gmra.mxu0 %v266
    %v316 = vpop.f32.mrf.mxu0
    %v317 = vadd.f32 %v304, %v316
    %v318 = vpop.f32.mrf.mxu0
    %319 = vdwg.mxu0
    %v320 = vmax.f32 %v317, 0.0
    %v321 = vld [vmem:[%s3] sm:$0x1]
    %v323 = vperm.slane %v321, 0
    %v325 = vmul.f32 %v320, %v323
    %326 = vadd.xlane.f32.xlu0 %v325
    %v327 = vpop.xlane.xlu0 %326
    %s328 = sld [smem:[#allocation2]]
    %v329 = vstv %s328
    %v330 = vadd.f32 %v327, %v329
    %vm331 = vcmask 7168
    %332 = vst.msk [vmem:[%s5] sm:$0xff] %vm331, %v330
    // Predicated region
    $region30: #{tpu_custom_call.1} parent=1 // pred_check
      _
    $region31: #{tpu_custom_call.1} parent=1 // pred_check_branch
      %334 = sbr.rel (0) target = $region33
    $region32: #{tpu_custom_call.1} parent=1 // pred_region
      _
    $region33: #{tpu_custom_call.1} parent=1 // pred_fallthru
      _
    // Predicated region
    $region34: #{tpu_custom_call.1} parent=1 // pred_check
      _
    $region35: #{tpu_custom_call.1} parent=1 // pred_check_branch
      %336 = sbr.rel (0) target = $region37
    $region36: #{tpu_custom_call.1} parent=1 // pred_region
      _
    $region37: #{tpu_custom_call.1} parent=1 // pred_fallthru
      _
    %337 = vsyncpa [#allocation4], 1
    %338 = vsyncpa [#allocation6], 1

</llo_original>
